<compile_context>
chip_gen: v6e
topology: v6e:2x2x1
jax: 0.10.0
libtpu: 0.0.40
codegen_flags: <defaults>
</compile_context>

<pallas_src>
import math
import functools

import jax
import jax.numpy as jnp
from jax.experimental import pallas as pl
from jax.experimental.pallas import tpu as pltpu


def _round_up(v, m):
    return ((v + m - 1) // m) * m


def _vmem_capacity_bytes():
    try:
        return int(pltpu.get_tpu_info().vmem_capacity_bytes)
    except Exception:
        pass
    try:
        kind = jax.devices()[0].device_kind.lower()
        if "v7" in kind:
            return 64 << 20
    except Exception:
        pass
    return 128 << 20


def _mxu_is_256_wide():
    # v6e / v7x have a 2x256^2 MXU; v2-v5 are 128-wide.
    try:
        kind = jax.devices()[0].device_kind.lower()
    except Exception:
        return False
    return not any(t in kind for t in ("v2", "v3", "v4", "v5"))


def _gcn_block_kernel(adj_ref, x_ref, x0_ref, w_ref, b_ref, o_ref, *,
                      beta, num_batch, dp, ep, group):
    # adj_ref : (TN, Np)               bf16  normalized-adjacency row block
    # x_ref   : (Np, B*Dp)             bf16  all nodes, batch in lanes (resident)
    # x0_ref  : (TN, B*Dp)             bf16  initial-residual features
    # w_ref   : (group*Dp, group*Ep)   bf16  weight (block-diagonal if group=2)
    # b_ref   : (1, Ep)                f32   bias (zero padded)
    # o_ref   : (B, TN, Ep)            out dtype
    tn = adj_ref.shape[0]

    # Neighborhood aggregation: one lane-dense MXU matmul for all batches.
    agg = jnp.dot(adj_ref[...], x_ref[...],
                  preferred_element_type=jnp.float32)          # (TN, B*Dp) f32

    w = w_ref[...]
    # Hoisted bias broadcast (one broadcast_in_dim, reused every iteration).
    bias_b = jnp.broadcast_to(b_ref[...], (tn, ep))
    inv_sqrt2 = 1.0 / math.sqrt(2.0)
    one_minus_beta = 1.0 - beta

    # Feature transform per batch (group of 1 or 2) via 128-lane-aligned
    # static slices; the residual mix + bf16 cast stays slice-local so live
    # f32 values are one (TN, group*Dp) panel at a time.
    for g0 in range(0, num_batch, group):
        lo = g0 * dp
        hi = (g0 + group) * dp
        m = (one_minus_beta * agg[:, lo:hi]
             + beta * x0_ref[:, lo:hi].astype(jnp.float32)
             ).astype(jnp.bfloat16)                            # (TN, group*Dp)
        y_all = jnp.dot(m, w, preferred_element_type=jnp.float32)
        for j in range(group):
            y = y_all[:, j * ep:(j + 1) * ep] + bias_b
            # Exact (erf) GELU, matching torch.nn.GELU() default.
            g = 0.5 * y * (1.0 + jax.lax.erf(y * inv_sqrt2))
            o_ref[g0 + j] = g.astype(o_ref.dtype)


def _vmem_estimate(tn, np_, b, dp, ep, group, out_bytes):
    resident_x = np_ * b * dp * 2 * 2        # bf16, assume double-buffered
    adj_blk = tn * np_ * 2 * 2
    x0_blk = tn * b * dp * 2 * 2
    out_blk = b * tn * ep * out_bytes * 2
    w_b = (group * dp) * (group * ep) * 2 * 2
    b_b = ep * 4 * 2
    interm = (tn * b * dp * 4            # agg f32
              + tn * ep * 4              # bias broadcast
              + tn * group * dp * 2      # mix slice bf16
              + 2 * tn * group * ep * 4)  # y / gelu f32
    return resident_x + adj_blk + x0_blk + out_blk + w_b + b_b + interm


def graph_conv_block_ii(x, x0, adj, w, b, beta, *, node_tile=512):
    """Fused FlexGConv(II) + GELU.

    x, x0 : (B, N, Din) node features (current layer / initial layer)
    adj   : (N, N) normalized adjacency, shared across the batch
    w     : (Din, Dout); b: (Dout,)
    """
    B, N, Din = x.shape
    Dout = w.shape[1]
    out_dtype = x.dtype
    out_bytes = jnp.dtype(out_dtype).itemsize

    # Pad channels to 128 lanes (lane-dense matmuls / stores) and nodes to a
    # multiple of 8 sublanes so any row tile is legal.
    Dp = _round_up(Din, 128)
    Ep = _round_up(Dout, 128)
    Np = _round_up(N, 8)

    def pack(a, d_pad):
        # (B, N, D) -> zero-pad rows+channels -> (Np, B*d_pad), batch in lanes.
        a = jnp.pad(a, ((0, 0), (0, Np - N), (0, d_pad - a.shape[-1])))
        return (jnp.transpose(a, (1, 0, 2))
                .reshape(Np, B * d_pad).astype(jnp.bfloat16))

    xt = pack(x, Dp)                            # bf16 MXU input
    x0t = pack(x0, Dp)                          # bf16 stream, upcast in-kernel
    adj_p = jnp.pad(adj, ((0, Np - N), (0, Np - N))).astype(jnp.bfloat16)

    # Pair batches into K=256 block-diagonal matmuls on 256-wide-MXU chips.
    group = 2 if (B % 2 == 0 and B >= 2 and _mxu_is_256_wide()) else 1
    wp = jnp.pad(w, ((0, Dp - Din), (0, Ep - Dout))).astype(jnp.bfloat16)
    if group == 2:
        zero = jnp.zeros_like(wp)
        wk = jnp.block([[wp, zero], [zero, wp]])        # (2*Dp, 2*Ep)
    else:
        wk = wp
    bp = jnp.pad(b, (0, Ep - Dout)).reshape(1, Ep).astype(jnp.float32)

    # ---- tile selection: divisor of Np, fits VMEM, prefer >= 2 grid steps ---
    vmem_ceiling = int(_vmem_capacity_bytes() * 0.75)
    cands = [d for d in range(8, min(node_tile, Np) + 1, 8) if Np % d == 0]
    if not cands:
        cands = [Np]
    cands.sort(reverse=True)
    fitting = [d for d in cands
               if _vmem_estimate(d, Np, B, Dp, Ep, group, out_bytes)
               <= vmem_ceiling]
    tn = fitting[0] if fitting else cands[-1]
    if Np // tn < 2:
        two_step = [d for d in (fitting if fitting else cands) if Np // d >= 2]
        if two_step:
            tn = max(two_step)      # give v7x's second TensorCore work
    grid = (Np // tn,)

    vmem_limit = int(_vmem_estimate(tn, Np, B, Dp, Ep, group, out_bytes) * 1.25
                     + (4 << 20))
    vmem_limit = max(16 << 20, min(vmem_limit, vmem_ceiling))

    kernel = functools.partial(_gcn_block_kernel, beta=float(beta),
                               num_batch=B, dp=Dp, ep=Ep, group=group)

    flops = 2.0 * Np * Np * B * Dp + 2.0 * B * Np * Dp * Ep * group
    bytes_accessed = (adj_p.size * 2 + xt.size * 2 + x0t.size * 2
                      + wk.size * 2 + bp.size * 4 + B * Np * Ep * out_bytes)

    out_padded = pl.pallas_call(
        kernel,
        out_shape=jax.ShapeDtypeStruct((B, Np, Ep), out_dtype),
        grid_spec=pltpu.PrefetchScalarGridSpec(
            num_scalar_prefetch=0,
            grid=grid,
            in_specs=[
                pl.BlockSpec((tn, Np), lambda i: (i, 0)),            # adj rows
                pl.BlockSpec((Np, B * Dp), lambda i: (0, 0)),        # x (res.)
                pl.BlockSpec((tn, B * Dp), lambda i: (i, 0)),        # x0 rows
                pl.BlockSpec((group * Dp, group * Ep),
                             lambda i: (0, 0)),                      # W (res.)
                pl.BlockSpec((1, Ep), lambda i: (0, 0)),             # bias
            ],
            out_specs=pl.BlockSpec((B, tn, Ep), lambda i: (0, i, 0)),
        ),
        compiler_params=pltpu.CompilerParams(
            dimension_semantics=("parallel",),
            vmem_limit_bytes=vmem_limit,
        ),
        cost_estimate=pl.CostEstimate(
            flops=int(flops),
            transcendentals=int(B * Np * Ep),
            bytes_accessed=int(bytes_accessed),
        ),
    )(adj_p, xt, x0t, wk, bp)

    # (B, Np, Ep) -> (B, N, Dout): drop row/channel zero padding only.
    return out_padded[:, :N, :Dout].astype(out_dtype)


def _reference(x, x0, adj, w, b, beta):
    agg = jnp.einsum("nm,bmd->bnd", adj, x)
    mix = (1.0 - beta) * agg + beta * x0
    y = jnp.einsum("bnd,de->bne", mix, w) + b
    return 0.5 * y * (1.0 + jax.lax.erf(y / jnp.sqrt(2.0)))


if __name__ == "__main__":
    B, N, Din, Dout = 2, 16, 32, 32
    beta = 0.3

    key = jax.random.PRNGKey(0)
    k_adj, k_x, k_x0, k_w, k_b = jax.random.split(key, 5)

    # Deterministic symmetric normalized adjacency with self-loops.
    raw = (jax.random.uniform(k_adj, (N, N)) > 0.7).astype(jnp.float32)
    a = jnp.maximum(raw, raw.T) + jnp.eye(N, dtype=jnp.float32)
    deg_inv_sqrt = 1.0 / jnp.sqrt(jnp.sum(a, axis=-1))
    adj = a * deg_inv_sqrt[:, None] * deg_inv_sqrt[None, :]

    # Deterministic parameter init (Xavier-uniform-style weight, small bias).
    limit = math.sqrt(6.0 / (Din + Dout))
    w = jax.random.uniform(k_w, (Din, Dout), minval=-limit, maxval=limit,
                           dtype=jnp.float32)
    bias = 0.1 * jax.random.normal(k_b, (Dout,), dtype=jnp.float32)

    x = jax.random.normal(k_x, (B, N, Din), dtype=jnp.float32)
    x0 = jax.random.normal(k_x0, (B, N, Din), dtype=jnp.float32)

    fwd = jax.jit(lambda x_, x0_, adj_, w_, b_:
                  graph_conv_block_ii(x_, x0_, adj_, w_, b_, beta))
    out = jax.block_until_ready(fwd(x, x0, adj, w, bias))

    ref = _reference(x, x0, adj, w, bias, beta)
    abs_err = float(jnp.max(jnp.abs(out - ref)))
    rel_err = float(jnp.linalg.norm(out - ref) /
                    (jnp.linalg.norm(ref) + 1e-12))
    # bf16 MXU inputs / bf16 x0 stream with f32 accumulation -> small
    # quantization error vs. the pure-f32 reference is expected.
    if abs_err > 1e-1 or rel_err > 2e-2:
        raise AssertionError(
            f"Pallas kernel mismatch vs reference: abs={abs_err:.3e} "
            f"rel={rel_err:.3e}")

    print("KERNEL_OK")
</pallas_src>

<mosaic_0001>
module attributes {stable_mosaic.version = 11 : i64} {
  func.func @_gcn_block_kernel(%arg0: i32, %arg1: memref<8x16xbf16, #tpu.memory_space<vmem>>, %arg2: memref<16x256xbf16, #tpu.memory_space<vmem>>, %arg3: memref<8x256xbf16, #tpu.memory_space<vmem>>, %arg4: memref<256x256xbf16, #tpu.memory_space<vmem>>, %arg5: memref<1x128xf32, #tpu.memory_space<vmem>>, %arg6: memref<2x8x128xf32, #tpu.memory_space<vmem>>) attributes {dimension_semantics = [#tpu.dimension_semantics<parallel>], iteration_bounds = array<i64: 2>, scalar_prefetch = 0 : i64, scratch_operands = 0 : i64, tpu.core_type = #tpu.core_type<tc>, window_params = [{transform_indices = @transform_0, window_bounds = array<i64: 8, 16>}, {pipeline_mode = #tpu.pipeline_mode<synchronous>, transform_indices = @transform_1, window_bounds = array<i64: 16, 256>}, {transform_indices = @transform_2, window_bounds = array<i64: 8, 256>}, {pipeline_mode = #tpu.pipeline_mode<synchronous>, transform_indices = @transform_3, window_bounds = array<i64: 256, 256>}, {pipeline_mode = #tpu.pipeline_mode<synchronous>, transform_indices = @transform_4, window_bounds = array<i64: 1, 128>}, {transform_indices = @transform_5, window_bounds = array<i64: 2, 8, 128>}]} {
    %c0 = arith.constant 0 : index
    %c0_0 = arith.constant 0 : index
    %0 = vector.load %arg1[%c0, %c0_0] : memref<8x16xbf16, #tpu.memory_space<vmem>>, vector<8x16xbf16>
    %c0_1 = arith.constant 0 : index
    %c0_2 = arith.constant 0 : index
    %1 = vector.load %arg2[%c0_1, %c0_2] : memref<16x256xbf16, #tpu.memory_space<vmem>>, vector<16x256xbf16>
    %cst = arith.constant dense<0.000000e+00> : vector<8x256xf32>
    %2 = tpu.matmul %0, %1, %cst {dimension_numbers = #tpu.dot_dimension_numbers<[1], [0], [0], [1], [0, 0, 1, 1], [], []>} : vector<8x16xbf16>, vector<16x256xbf16>, vector<8x256xf32> -> vector<8x256xf32>
    %c0_3 = arith.constant 0 : index
    %c0_4 = arith.constant 0 : index
    %3 = vector.load %arg4[%c0_3, %c0_4] : memref<256x256xbf16, #tpu.memory_space<vmem>>, vector<256x256xbf16>
    %c0_5 = arith.constant 0 : index
    %c0_6 = arith.constant 0 : index
    %4 = vector.load %arg5[%c0_5, %c0_6] : memref<1x128xf32, #tpu.memory_space<vmem>>, vector<1x128xf32>
    %5 = vector.shape_cast %4 : vector<1x128xf32> to vector<1x128xf32>
    %6 = vector.broadcast %5 : vector<1x128xf32> to vector<8x128xf32>
    %cst_7 = arith.constant 0.699999988 : f32
    %7 = vector.broadcast %cst_7 : f32 to vector<8x256xf32>
    %8 = arith.mulf %7, %2 : vector<8x256xf32>
    %c0_8 = arith.constant 0 : index
    %c0_9 = arith.constant 0 : index
    %9 = vector.load %arg3[%c0_8, %c0_9] : memref<8x256xbf16, #tpu.memory_space<vmem>>, vector<8x256xbf16>
    %10 = arith.extf %9 : vector<8x256xbf16> to vector<8x256xf32>
    %cst_10 = arith.constant 3.000000e-01 : f32
    %11 = vector.broadcast %cst_10 : f32 to vector<8x256xf32>
    %12 = arith.mulf %11, %10 : vector<8x256xf32>
    %13 = arith.addf %8, %12 : vector<8x256xf32>
    %14 = arith.truncf %13 : vector<8x256xf32> to vector<8x256xbf16>
    %cst_11 = arith.constant dense<0.000000e+00> : vector<8x256xf32>
    %15 = tpu.matmul %14, %3, %cst_11 {dimension_numbers = #tpu.dot_dimension_numbers<[1], [0], [0], [1], [0, 0, 1, 1], [], []>} : vector<8x256xbf16>, vector<256x256xbf16>, vector<8x256xf32> -> vector<8x256xf32>
    %16 = vector.extract_strided_slice %15 {offsets = [0, 0], sizes = [8, 128], strides = [1, 1]} : vector<8x256xf32> to vector<8x128xf32>
    %17 = arith.addf %16, %6 : vector<8x128xf32>
    %cst_12 = arith.constant 5.000000e-01 : f32
    %18 = vector.broadcast %cst_12 : f32 to vector<8x128xf32>
    %19 = arith.mulf %18, %17 : vector<8x128xf32>
    %cst_13 = arith.constant 0.707106769 : f32
    %20 = vector.broadcast %cst_13 : f32 to vector<8x128xf32>
    %21 = arith.mulf %17, %20 : vector<8x128xf32>
    %22 = math.erf %21 : vector<8x128xf32>
    %cst_14 = arith.constant 1.000000e+00 : f32
    %23 = vector.broadcast %cst_14 : f32 to vector<8x128xf32>
    %24 = arith.addf %23, %22 : vector<8x128xf32>
    %25 = arith.mulf %19, %24 : vector<8x128xf32>
    %c0_15 = arith.constant 0 : index
    %c0_16 = arith.constant 0 : index
    %c0_17 = arith.constant 0 : index
    %26 = vector.load %arg6[%c0_15, %c0_16, %c0_17] : memref<2x8x128xf32, #tpu.memory_space<vmem>>, vector<1x8x128xf32>
    %27 = vector.shape_cast %26 : vector<1x8x128xf32> to vector<8x128xf32>
    %28 = vector.shape_cast %25 : vector<8x128xf32> to vector<1x8x128xf32>
    tpu.vector_store %arg6[%c0_15, %c0_16, %c0_17], %28 {strides = array<i32>} : memref<2x8x128xf32, #tpu.memory_space<vmem>>, vector<1x8x128xf32>,
    %29 = vector.extract_strided_slice %15 {offsets = [0, 128], sizes = [8, 128], strides = [1, 1]} : vector<8x256xf32> to vector<8x128xf32>
    %30 = arith.addf %29, %6 : vector<8x128xf32>
    %cst_18 = arith.constant 5.000000e-01 : f32
    %31 = vector.broadcast %cst_18 : f32 to vector<8x128xf32>
    %32 = arith.mulf %31, %30 : vector<8x128xf32>
    %cst_19 = arith.constant 0.707106769 : f32
    %33 = vector.broadcast %cst_19 : f32 to vector<8x128xf32>
    %34 = arith.mulf %30, %33 : vector<8x128xf32>
    %35 = math.erf %34 : vector<8x128xf32>
    %cst_20 = arith.constant 1.000000e+00 : f32
    %36 = vector.broadcast %cst_20 : f32 to vector<8x128xf32>
    %37 = arith.addf %36, %35 : vector<8x128xf32>
    %38 = arith.mulf %32, %37 : vector<8x128xf32>
    %c1 = arith.constant 1 : index
    %c0_21 = arith.constant 0 : index
    %c0_22 = arith.constant 0 : index
    %39 = vector.load %arg6[%c1, %c0_21, %c0_22] : memref<2x8x128xf32, #tpu.memory_space<vmem>>, vector<1x8x128xf32>
    %40 = vector.shape_cast %39 : vector<1x8x128xf32> to vector<8x128xf32>
    %41 = vector.shape_cast %38 : vector<8x128xf32> to vector<1x8x128xf32>
    tpu.vector_store %arg6[%c1, %c0_21, %c0_22], %41 {strides = array<i32>} : memref<2x8x128xf32, #tpu.memory_space<vmem>>, vector<1x8x128xf32>,
    return
  }
  func.func @transform_0(%arg0: i32) -> (i32, i32) {
    %c0_i32 = arith.constant 0 : i32
    %c0_i32_0 = arith.constant 0 : i32
    return %arg0, %c0_i32 : i32, i32
  }
  func.func @transform_1(%arg0: i32) -> (i32, i32) {
    %c0_i32 = arith.constant 0 : i32
    %c0_i32_0 = arith.constant 0 : i32
    %c0_i32_1 = arith.constant 0 : i32
    return %c0_i32, %c0_i32_0 : i32, i32
  }
  func.func @transform_2(%arg0: i32) -> (i32, i32) {
    %c0_i32 = arith.constant 0 : i32
    %c0_i32_0 = arith.constant 0 : i32
    return %arg0, %c0_i32 : i32, i32
  }
  func.func @transform_3(%arg0: i32) -> (i32, i32) {
    %c0_i32 = arith.constant 0 : i32
    %c0_i32_0 = arith.constant 0 : i32
    %c0_i32_1 = arith.constant 0 : i32
    return %c0_i32, %c0_i32_0 : i32, i32
  }
  func.func @transform_4(%arg0: i32) -> (i32, i32) {
    %c0_i32 = arith.constant 0 : i32
    %c0_i32_0 = arith.constant 0 : i32
    %c0_i32_1 = arith.constant 0 : i32
    return %c0_i32, %c0_i32_0 : i32, i32
  }
  func.func @transform_5(%arg0: i32) -> (i32, i32, i32) {
    %c0_i32 = arith.constant 0 : i32
    %c0_i32_0 = arith.constant 0 : i32
    %c0_i32_1 = arith.constant 0 : i32
    return %c0_i32, %arg0, %c0_i32_0 : i32, i32, i32
  }
}

</mosaic_0001>

<llo_original>
// kernel: _lambda_.1
$region0: #{_lambda_.1}
  #allocation0 [shape = 'u32[]', space=smem, size = 0x4, offset = 0x4, fixed_abs, tag = 'smem constant byte address 0x4 - core index']
  #allocation1 [shape = 'u32[144,128]{1,0:T(1,128)}', space=vmem, size = 0x12000, scoped, tag = 'internal scratch']
  %s0 = inlined_call_operand.vmem [shape: bf16[16,16], index: 0, kind: input, shape index: {}]
  %s1 = inlined_call_operand.vmem [shape: bf16[16,256], index: 1, kind: input, shape index: {}]
  %s2 = inlined_call_operand.vmem [shape: bf16[16,256], index: 2, kind: input, shape index: {}]
  %s3 = inlined_call_operand.vmem [shape: bf16[256,256], index: 3, kind: input, shape index: {}]
  %s4 = inlined_call_operand.vmem [shape: f32[1,128], index: 4, kind: input, shape index: {}]
  %s5 = inlined_call_operand.hbm [shape: f32[2,16,128], index: 5, kind: output, shape index: {}]
  %s6 = sld [smem:[#allocation0]]
  $region53: #{_lambda_.1} parent=0
    _
  %s8 = ssub.s32 1, %s6
  %s9 = scalar_select 0, %s8, %s6
  $region1: #{_lambda_.1} parent=0
    #allocation2 [shape = 'u8[16384]{0}', space=vmem, size = 0x4000, scoped, tag = 'output window, operand 0']
    #allocation3 [shape = 's32[2]{0}', space=sflag, size = 0x8, scoped, tag = 'scoped memory for _lambda_.1']
    %10 = vsyncpa [#allocation3], 0
    %s11 = scalar_lea.sflag [#allocation3], 1
    %12 = vsyncpa %s11, 0
    loop: start=0, step=1, limit=4
    $region2: #{_lambda_.1} parent=1 // loop_pre_header
      _
    $region3: #{_lambda_.1} parent=1 // loop_header
      %s14 = sphi 0, %s18
      %p15 = scmp.ge.s32.totalorder %s14, 4
      %s24 = sphi 0, %s26
      %s27 = sphi 0, %s24
      %s28 = sphi 0, %s27
      %s44 = sphi 0, %s28
      %s48 = sphi 0, %s48
      %s50 = sphi 0, %s48
      %s51 = sphi 0, %s50
      %s65 = sphi 0, %s51
      %s71 = sphi 0, %s73
      %s74 = sphi 0, %s71
      %s75 = sphi 0, %s74
      %s91 = sphi 0, %s75
      %s95 = sphi 0, %s95
      %s97 = sphi 0, %s95
      %s98 = sphi 0, %s97
      %s112 = sphi 0, %s98
      %s116 = sphi 0, %s116
      %s118 = sphi 0, %s116
      %s119 = sphi 0, %s118
      %s133 = sphi 0, %s119
      %s139 = sphi 0, %s141
      %s142 = sphi 0, %s139
      %s143 = sphi 0, %s142
      %s159 = sphi 0, %s143
    $region4: #{_lambda_.1} parent=1 // loop_header_branch
      %17 = sbr.rel (%p15) target = $region8
    $region5: #{_lambda_.1} parent=1 // loop_body
      %s19 = ssub.s32 %s14, 1
      %s20 = ssub.s32 %s14, 2
      %s21 = sadd.s32 %s14, 1
      %s22 = ssub.s32 %s14, %s21
      %p23 = scmp.eq.s32.totalorder %s22, 0
      %s25 = sadd.s32 %s24, 1
      %s26 = scalar_select %p23, %s24, %s25
      %p29 = pneg %p23
      %p30 = scmp.eq.s32.totalorder %s14, 1
      %p31 = por %p29, %p30
      %p32 = scmp.ne.s32.totalorder %s24, %s27
      %p33 = scmp.eq.s32.totalorder %s14, 0
      %p34 = por %p32, %p33
      %p35 = scmp.ne.s32.totalorder %s24, %s27
      %p36 = scmp.eq.s32.totalorder %s19, 1
      %p37 = por %p35, %p36
      %p38 = scmp.ne.s32.totalorder %s27, %s28
      %p39 = scmp.eq.s32.totalorder %s19, 0
      %p40 = por %p38, %p39
      %p41 = scmp.ne.s32.totalorder %s27, %s28
      %p42 = scmp.eq.s32.totalorder %s20, 1
      %p43 = por %p41, %p42
      %p45 = scmp.ne.s32.totalorder %s28, %s44
      %p46 = scmp.eq.s32.totalorder %s20, 0
      %p47 = por %p45, %p46
      %s49 = sadd.s32 %s48, 1
      %p52 = scmp.eq.s32.totalorder %s14, 1
      %p53 = scmp.ne.s32.totalorder %s48, %s50
      %p54 = scmp.eq.s32.totalorder %s14, 0
      %p55 = por %p53, %p54
      %p56 = scmp.ne.s32.totalorder %s48, %s50
      %p57 = scmp.eq.s32.totalorder %s19, 1
      %p58 = por %p56, %p57
      %p59 = scmp.ne.s32.totalorder %s50, %s51
      %p60 = scmp.eq.s32.totalorder %s19, 0
      %p61 = por %p59, %p60
      %p62 = scmp.ne.s32.totalorder %s50, %s51
      %p63 = scmp.eq.s32.totalorder %s20, 1
      %p64 = por %p62, %p63
      %p66 = scmp.ne.s32.totalorder %s51, %s65
      %p67 = scmp.eq.s32.totalorder %s20, 0
      %p68 = por %p66, %p67
      %s69 = ssub.s32 %s14, %s21
      %p70 = scmp.eq.s32.totalorder %s69, 0
      %s72 = sadd.s32 %s71, 1
      %s73 = scalar_select %p70, %s71, %s72
      %p76 = pneg %p70
      %p77 = scmp.eq.s32.totalorder %s14, 1
      %p78 = por %p76, %p77
      %p79 = scmp.ne.s32.totalorder %s71, %s74
      %p80 = scmp.eq.s32.totalorder %s14, 0
      %p81 = por %p79, %p80
      %p82 = scmp.ne.s32.totalorder %s71, %s74
      %p83 = scmp.eq.s32.totalorder %s19, 1
      %p84 = por %p82, %p83
      %p85 = scmp.ne.s32.totalorder %s74, %s75
      %p86 = scmp.eq.s32.totalorder %s19, 0
      %p87 = por %p85, %p86
      %p88 = scmp.ne.s32.totalorder %s74, %s75
      %p89 = scmp.eq.s32.totalorder %s20, 1
      %p90 = por %p88, %p89
      %p92 = scmp.ne.s32.totalorder %s75, %s91
      %p93 = scmp.eq.s32.totalorder %s20, 0
      %p94 = por %p92, %p93
      %s96 = sadd.s32 %s95, 1
      %p99 = scmp.eq.s32.totalorder %s14, 1
      %p100 = scmp.ne.s32.totalorder %s95, %s97
      %p101 = scmp.eq.s32.totalorder %s14, 0
      %p102 = por %p100, %p101
      %p103 = scmp.ne.s32.totalorder %s95, %s97
      %p104 = scmp.eq.s32.totalorder %s19, 1
      %p105 = por %p103, %p104
      %p106 = scmp.ne.s32.totalorder %s97, %s98
      %p107 = scmp.eq.s32.totalorder %s19, 0
      %p108 = por %p106, %p107
      %p109 = scmp.ne.s32.totalorder %s97, %s98
      %p110 = scmp.eq.s32.totalorder %s20, 1
      %p111 = por %p109, %p110
      %p113 = scmp.ne.s32.totalorder %s98, %s112
      %p114 = scmp.eq.s32.totalorder %s20, 0
      %p115 = por %p113, %p114
      %s117 = sadd.s32 %s116, 1
      %p120 = scmp.eq.s32.totalorder %s14, 1
      %p121 = scmp.ne.s32.totalorder %s116, %s118
      %p122 = scmp.eq.s32.totalorder %s14, 0
      %p123 = por %p121, %p122
      %p124 = scmp.ne.s32.totalorder %s116, %s118
      %p125 = scmp.eq.s32.totalorder %s19, 1
      %p126 = por %p124, %p125
      %p127 = scmp.ne.s32.totalorder %s118, %s119
      %p128 = scmp.eq.s32.totalorder %s19, 0
      %p129 = por %p127, %p128
      %p130 = scmp.ne.s32.totalorder %s118, %s119
      %p131 = scmp.eq.s32.totalorder %s20, 1
      %p132 = por %p130, %p131
      %p134 = scmp.ne.s32.totalorder %s119, %s133
      %p135 = scmp.eq.s32.totalorder %s20, 0
      %p136 = por %p134, %p135
      %s137 = ssub.s32 %s14, %s21
      %p138 = scmp.eq.s32.totalorder %s137, 0
      %s140 = sadd.s32 %s139, 1
      %s141 = scalar_select %p138, %s139, %s140
      %p144 = pneg %p138
      %p145 = scmp.eq.s32.totalorder %s14, 1
      %p146 = por %p144, %p145
      %p147 = scmp.ne.s32.totalorder %s139, %s142
      %p148 = scmp.eq.s32.totalorder %s14, 0
      %p149 = por %p147, %p148
      %p150 = scmp.ne.s32.totalorder %s139, %s142
      %p151 = scmp.eq.s32.totalorder %s19, 1
      %p152 = por %p150, %p151
      %p153 = scmp.ne.s32.totalorder %s142, %s143
      %p154 = scmp.eq.s32.totalorder %s19, 0
      %p155 = por %p153, %p154
      %p156 = scmp.ne.s32.totalorder %s142, %s143
      %p157 = scmp.eq.s32.totalorder %s20, 1
      %p158 = por %p156, %p157
      %p160 = scmp.ne.s32.totalorder %s143, %s159
      %p161 = scmp.eq.s32.totalorder %s20, 0
      %p162 = por %p160, %p161
      %p163 = scmp.le.s32.totalorder 1, %s14
      %p164 = scmp.lt.s32.totalorder %s14, 3
      %p165 = pnand %p163, %p164
      %p166 = pneg %p165
      // Predicated region
      $region9: #{_lambda_.1} parent=5 // pred_check
        _
      $region10: #{_lambda_.1} parent=5 // pred_check_branch
        %168 = sbr.rel (%p165) target = $region12
      $region11: #{_lambda_.1} parent=5 // pred_region
        %s169 = ssub.s32 %s14, 1
        // Predicated region
        $region13: #{_lambda_.1} parent=11 // pred_check
          %p170 = pneg %p61
        $region14: #{_lambda_.1} parent=11 // pred_check_branch
          %172 = sbr.rel (%p170) target = $region16
        $region15: #{_lambda_.1} parent=11 // pred_region
          _
        $region16: #{_lambda_.1} parent=11 // pred_fallthru
          _
        // Predicated region
        $region17: #{_lambda_.1} parent=11 // pred_check
          %p173 = pneg %p108
        $region18: #{_lambda_.1} parent=11 // pred_check_branch
          %175 = sbr.rel (%p173) target = $region20
        $region19: #{_lambda_.1} parent=11 // pred_region
          _
        $region20: #{_lambda_.1} parent=11 // pred_fallthru
          _
        // Predicated region
        $region21: #{_lambda_.1} parent=11 // pred_check
          %p176 = pneg %p129
        $region22: #{_lambda_.1} parent=11 // pred_check_branch
          %178 = sbr.rel (%p176) target = $region24
        $region23: #{_lambda_.1} parent=11 // pred_region
          _
        $region24: #{_lambda_.1} parent=11 // pred_fallthru
          _
      $region12: #{_lambda_.1} parent=5 // pred_fallthru
        _
      %p179 = scmp.lt.s32.totalorder %s14, 2
      // Predicated region
      $region25: #{_lambda_.1} parent=5 // pred_check
        %p180 = pneg %p179
      $region26: #{_lambda_.1} parent=5 // pred_check_branch
        %182 = sbr.rel (%p180) target = $region28
      $region27: #{_lambda_.1} parent=5 // pred_region
        // Predicated region
        $region29: #{_lambda_.1} parent=27 // pred_check
          %p183 = pneg %p34
        $region30: #{_lambda_.1} parent=27 // pred_check_branch
          %185 = sbr.rel (%p183) target = $region32
        $region31: #{_lambda_.1} parent=27 // pred_region
          %p186 = scmp.lt.s32.totalorder %s14, 1
          %s187 = scalar_select %p186, %s14, 1
          %s188 = smul.addr %s187, 4
          %s189 = scalar_lea.vmem %s0, %s188
        $region32: #{_lambda_.1} parent=27 // pred_fallthru
          _
        // Predicated region
        $region33: #{_lambda_.1} parent=27 // pred_check
          %p190 = pneg %p81
        $region34: #{_lambda_.1} parent=27 // pred_check_branch
          %192 = sbr.rel (%p190) target = $region36
        $region35: #{_lambda_.1} parent=27 // pred_region
          %p193 = scmp.lt.s32.totalorder %s14, 1
          %s194 = scalar_select %p193, %s14, 1
          %s195 = smul.addr %s194, 2
          %s196 = smul.addr %s195, 4
          %s197 = scalar_lea.vmem %s2, %s196
        $region36: #{_lambda_.1} parent=27 // pred_fallthru
          _
      $region28: #{_lambda_.1} parent=5 // pred_fallthru
        _
      %p198 = scmp.le.s32.totalorder 1, %s14
      %p199 = scmp.lt.s32.totalorder %s14, 3
      %p200 = pnand %p198, %p199
      %p201 = pneg %p200
      // Predicated region
      $region37: #{_lambda_.1} parent=5 // pred_check
        _
      $region38: #{_lambda_.1} parent=5 // pred_check_branch
        %203 = sbr.rel (%p200) target = $region40
      $region39: #{_lambda_.1} parent=5 // pred_region
        %s204 = ssub.s32 %s14, 1
        %p205 = scmp.lt.s32.totalorder %s19, 1
        %s206 = scalar_select %p205, %s19, 1
        %s207 = smul.addr %s206, 4
        %s208 = scalar_lea.vmem %s0, %s207
        %p209 = pneg %p40
        %p210 = pneg %p37
        %p211 = pneg %p61
        %p212 = pneg %p58
        %p213 = scmp.lt.s32.totalorder %s19, 1
        %s214 = scalar_select %p213, %s19, 1
        %s215 = smul.addr %s214, 2
        %s216 = smul.addr %s215, 4
        %s217 = scalar_lea.vmem %s2, %s216
        %p218 = pneg %p87
        %p219 = pneg %p84
        %p220 = pneg %p108
        %p221 = pneg %p105
        %p222 = pneg %p129
        %p223 = pneg %p126
        %p224 = pneg %p155
        %p225 = pneg %p152
        %s226 = sand.u32 %s142, 1
        %s227 = scalar_lea.sflag [#allocation3], %s226
        %s228 = sand.u32 %s142, 1
        %s229 = smul.addr %s228, 16
        %s230 = scalar_lea.vmem [#allocation2], %s229
        %p231 = scmp.lt.s32.totalorder %s19, 1
        %s232 = scalar_select %p231, %s19, 1
        %s233 = smul.addr %s232, 4
        %s234 = scalar_lea.vmem %s0, %s233
        %p235 = scmp.lt.s32.totalorder %s19, 1
        %s236 = scalar_select %p235, %s19, 1
        %s237 = smul.addr %s236, 2
        %s238 = smul.addr %s237, 4
        %s239 = scalar_lea.vmem %s2, %s238
        %v241 = vld [vmem:[%s234] sm:$0xf]
        %v242 = vld [vmem:[%s1] sm:$0xff]
        %v243 = vld [vmem:[%s1 + $0x8] sm:$0xff]
        %v246 = vunpack.c.l.b16 %v242
        %v247 = vunpack.c.h.b16 %v242
        %v248 = vunpack.c.l.b16 %v243
        %v249 = vunpack.c.h.b16 %v243
        %v250 = vpack.c.b16 %v248, %v246
        %v251 = vpack.c.b16 %v249, %v247
        %vm254 = vcmask 130048
        %v256 = vsel %vm254, %v241, 0
        %258 = vmatprep.subr.bf16.mxu0 0
        %259 = vmatpush1.bf16.msra.mxu0 0
        %260 = vmatprep.subr.bf16.mxu0 0
        %261 = vmatpush1.bf16.msra.mxu0 0
        %262 = vmatprep.subr.bf16.mxu0 0
        %263 = vmatpush1.bf16.msra.mxu0 0
        %264 = vmatprep.subr.bf16.mxu0 0
        %265 = vmatpush1.bf16.msra.mxu0 0
        %266 = vmatprep.subr.bf16.mxu0 0
        %267 = vmatpush1.bf16.msra.mxu0 0
        %268 = vmatprep.subr.bf16.mxu0 0
        %269 = vmatpush1.bf16.msra.mxu0 0
        %270 = vmatprep.subr.bf16.mxu0 0
        %271 = vmatpush1.bf16.msra.mxu0 0
        %272 = vmatprep.subr.bf16.mxu0 %v251
        %273 = vmatpush1.bf16.msra.mxu0 %v250
        %274 = vmatprep.subr.bf16.mxu0 0
        %275 = vmatpush2.bf16.msra.mxu0 0
        %276 = vmatprep.subr.bf16.mxu0 0
        %277 = vmatpush2.bf16.msra.mxu0 0
        %278 = vmatprep.subr.bf16.mxu0 0
        %279 = vmatpush2.bf16.msra.mxu0 0
        %280 = vmatprep.subr.bf16.mxu0 0
        %281 = vmatpush2.bf16.msra.mxu0 0
        %282 = vmatprep.subr.bf16.mxu0 0
        %283 = vmatpush2.bf16.msra.mxu0 0
        %284 = vmatprep.subr.bf16.mxu0 0
        %285 = vmatpush2.bf16.msra.mxu0 0
        %286 = vmatprep.subr.bf16.mxu0 0
        %287 = vmatpush2.bf16.msra.mxu0 0
        %288 = vmatprep.subr.bf16.mxu0 0
        %289 = vmatpush2.bf16.msra.mxu0 0
        %290 = vmatprep.mubr.bf16.mxu0 0
        %291 = vmatmul.mubr.bf16.gmra.mxu0 %v256
        %v292 = vpop.f32.mrf.mxu0
        %v293 = vadd.f32 0.0, %v292
        %v294 = vpop.f32.mrf.mxu0
        %v295 = vadd.f32 0.0, %v294
        %v296 = vpop.f32.mrf.mxu0
        %v297 = vpop.f32.mrf.mxu0
        %298 = vdwg.mxu0
        %v299 = vld [vmem:[%s3] sm:$0xff]
        %v300 = vld [vmem:[%s3 + $0x8] sm:$0xff]
        %v301 = vld [vmem:[%s3 + $0x10] sm:$0xff]
        %v302 = vld [vmem:[%s3 + $0x18] sm:$0xff]
        %v303 = vld [vmem:[%s3 + $0x20] sm:$0xff]
        %v304 = vld [vmem:[%s3 + $0x28] sm:$0xff]
        %v305 = vld [vmem:[%s3 + $0x30] sm:$0xff]
        %v306 = vld [vmem:[%s3 + $0x38] sm:$0xff]
        %v307 = vld [vmem:[%s3 + $0x40] sm:$0xff]
        %v308 = vld [vmem:[%s3 + $0x48] sm:$0xff]
        %v309 = vld [vmem:[%s3 + $0x50] sm:$0xff]
        %v310 = vld [vmem:[%s3 + $0x58] sm:$0xff]
        %v311 = vld [vmem:[%s3 + $0x60] sm:$0xff]
        %v312 = vld [vmem:[%s3 + $0x68] sm:$0xff]
        %v313 = vld [vmem:[%s3 + $0x70] sm:$0xff]
        %v314 = vld [vmem:[%s3 + $0x78] sm:$0xff]
        %v315 = vld [vmem:[%s3 + $0x80] sm:$0xff]
        %v316 = vld [vmem:[%s3 + $0x88] sm:$0xff]
        %v317 = vld [vmem:[%s3 + $0x90] sm:$0xff]
        %v318 = vld [vmem:[%s3 + $0x98] sm:$0xff]
        %v319 = vld [vmem:[%s3 + $0xa0] sm:$0xff]
        %v320 = vld [vmem:[%s3 + $0xa8] sm:$0xff]
        %v321 = vld [vmem:[%s3 + $0xb0] sm:$0xff]
        %v322 = vld [vmem:[%s3 + $0xb8] sm:$0xff]
        %v323 = vld [vmem:[%s3 + $0xc0] sm:$0xff]
        %v324 = vld [vmem:[%s3 + $0xc8] sm:$0xff]
        %v325 = vld [vmem:[%s3 + $0xd0] sm:$0xff]
        %v326 = vld [vmem:[%s3 + $0xd8] sm:$0xff]
        %v327 = vld [vmem:[%s3 + $0xe0] sm:$0xff]
        %v328 = vld [vmem:[%s3 + $0xe8] sm:$0xff]
        %v329 = vld [vmem:[%s3 + $0xf0] sm:$0xff]
        %v330 = vld [vmem:[%s3 + $0xf8] sm:$0xff]
        %v331 = vld [vmem:[%s4] sm:$0x1]
        %v333 = vlaneseq
        %v334 = vshrl.u32 %v333, 7
        %v335 = vsub.s32 0, %v334
        %v336 = vrot.slane %v331, %v335
        %v338 = vmul.f32 %v293, 0.7
        %v339 = vmul.f32 %v295, 0.7
        %v340 = vld [vmem:[%s239] sm:$0xff]
        %v341 = vunpack.c.l.bf16 %v340
        %v342 = vunpack.c.h.bf16 %v340
        %v343 = vmul.f32 %v341, 0.3
        %v344 = vmul.f32 %v342, 0.3
        %v345 = vadd.f32 %v338, %v343
        %v346 = vadd.f32 %v339, %v344
        %v347 = vpack.c.bf16 %v345, %v345
        %v348 = vpack.c.bf16 %v346, %v346
        %v381 = vunpack.c.l.b16 %v299
        %v382 = vunpack.c.h.b16 %v299
        %v383 = vunpack.c.l.b16 %v300
        %v384 = vunpack.c.h.b16 %v300
        %v385 = vunpack.c.l.b16 %v301
        %v386 = vunpack.c.h.b16 %v301
        %v387 = vunpack.c.l.b16 %v302
        %v388 = vunpack.c.h.b16 %v302
        %v389 = vunpack.c.l.b16 %v303
        %v390 = vunpack.c.h.b16 %v303
        %v391 = vunpack.c.l.b16 %v304
        %v392 = vunpack.c.h.b16 %v304
        %v393 = vunpack.c.l.b16 %v305
        %v394 = vunpack.c.h.b16 %v305
        %v395 = vunpack.c.l.b16 %v306
        %v396 = vunpack.c.h.b16 %v306
        %v397 = vunpack.c.l.b16 %v307
        %v398 = vunpack.c.h.b16 %v307
        %v399 = vunpack.c.l.b16 %v308
        %v400 = vunpack.c.h.b16 %v308
        %v401 = vunpack.c.l.b16 %v309
        %v402 = vunpack.c.h.b16 %v309
        %v403 = vunpack.c.l.b16 %v310
        %v404 = vunpack.c.h.b16 %v310
        %v405 = vunpack.c.l.b16 %v311
        %v406 = vunpack.c.h.b16 %v311
        %v407 = vunpack.c.l.b16 %v312
        %v408 = vunpack.c.h.b16 %v312
        %v409 = vunpack.c.l.b16 %v313
        %v410 = vunpack.c.h.b16 %v313
        %v411 = vunpack.c.l.b16 %v314
        %v412 = vunpack.c.h.b16 %v314
        %v413 = vunpack.c.l.b16 %v315
        %v414 = vunpack.c.h.b16 %v315
        %v415 = vunpack.c.l.b16 %v316
        %v416 = vunpack.c.h.b16 %v316
        %v417 = vunpack.c.l.b16 %v317
        %v418 = vunpack.c.h.b16 %v317
        %v419 = vunpack.c.l.b16 %v318
        %v420 = vunpack.c.h.b16 %v318
        %v421 = vunpack.c.l.b16 %v319
        %v422 = vunpack.c.h.b16 %v319
        %v423 = vunpack.c.l.b16 %v320
        %v424 = vunpack.c.h.b16 %v320
        %v425 = vunpack.c.l.b16 %v321
        %v426 = vunpack.c.h.b16 %v321
        %v427 = vunpack.c.l.b16 %v322
        %v428 = vunpack.c.h.b16 %v322
        %v429 = vunpack.c.l.b16 %v323
        %v430 = vunpack.c.h.b16 %v323
        %v431 = vunpack.c.l.b16 %v324
        %v432 = vunpack.c.h.b16 %v324
        %v433 = vunpack.c.l.b16 %v325
        %v434 = vunpack.c.h.b16 %v325
        %v435 = vunpack.c.l.b16 %v326
        %v436 = vunpack.c.h.b16 %v326
        %v437 = vunpack.c.l.b16 %v327
        %v438 = vunpack.c.h.b16 %v327
        %v439 = vunpack.c.l.b16 %v328
        %v440 = vunpack.c.h.b16 %v328
        %v441 = vunpack.c.l.b16 %v329
        %v442 = vunpack.c.h.b16 %v329
        %v443 = vunpack.c.l.b16 %v330
        %v444 = vunpack.c.h.b16 %v330
        %v445 = vpack.c.b16 %v383, %v381
        %v446 = vpack.c.b16 %v384, %v382
        %v447 = vpack.c.b16 %v387, %v385
        %v448 = vpack.c.b16 %v388, %v386
        %v449 = vpack.c.b16 %v391, %v389
        %v450 = vpack.c.b16 %v392, %v390
        %v451 = vpack.c.b16 %v395, %v393
        %v452 = vpack.c.b16 %v396, %v394
        %v453 = vpack.c.b16 %v399, %v397
        %v454 = vpack.c.b16 %v400, %v398
        %v455 = vpack.c.b16 %v403, %v401
        %v456 = vpack.c.b16 %v404, %v402
        %v457 = vpack.c.b16 %v407, %v405
        %v458 = vpack.c.b16 %v408, %v406
        %v459 = vpack.c.b16 %v411, %v409
        %v460 = vpack.c.b16 %v412, %v410
        %v461 = vpack.c.b16 %v415, %v413
        %v462 = vpack.c.b16 %v416, %v414
        %v463 = vpack.c.b16 %v419, %v417
        %v464 = vpack.c.b16 %v420, %v418
        %v465 = vpack.c.b16 %v423, %v421
        %v466 = vpack.c.b16 %v424, %v422
        %v467 = vpack.c.b16 %v427, %v425
        %v468 = vpack.c.b16 %v428, %v426
        %v469 = vpack.c.b16 %v431, %v429
        %v470 = vpack.c.b16 %v432, %v430
        %v471 = vpack.c.b16 %v435, %v433
        %v472 = vpack.c.b16 %v436, %v434
        %v473 = vpack.c.b16 %v439, %v437
        %v474 = vpack.c.b16 %v440, %v438
        %v475 = vpack.c.b16 %v443, %v441
        %v476 = vpack.c.b16 %v444, %v442
        %509 = vmatprep.subr.bf16.mxu0 %v460
        %510 = vmatpush1.bf16.msra.mxu0 %v459
        %511 = vmatprep.subr.bf16.mxu0 %v458
        %512 = vmatpush1.bf16.msra.mxu0 %v457
        %513 = vmatprep.subr.bf16.mxu0 %v456
        %514 = vmatpush1.bf16.msra.mxu0 %v455
        %515 = vmatprep.subr.bf16.mxu0 %v454
        %516 = vmatpush1.bf16.msra.mxu0 %v453
        %517 = vmatprep.subr.bf16.mxu0 %v452
        %518 = vmatpush1.bf16.msra.mxu0 %v451
        %519 = vmatprep.subr.bf16.mxu0 %v450
        %520 = vmatpush1.bf16.msra.mxu0 %v449
        %521 = vmatprep.subr.bf16.mxu0 %v448
        %522 = vmatpush1.bf16.msra.mxu0 %v447
        %523 = vmatprep.subr.bf16.mxu0 %v446
        %524 = vmatpush1.bf16.msra.mxu0 %v445
        %525 = vmatprep.subr.bf16.mxu0 %v476
        %526 = vmatpush2.bf16.msra.mxu0 %v475
        %527 = vmatprep.subr.bf16.mxu0 %v474
        %528 = vmatpush2.bf16.msra.mxu0 %v473
        %529 = vmatprep.subr.bf16.mxu0 %v472
        %530 = vmatpush2.bf16.msra.mxu0 %v471
        %531 = vmatprep.subr.bf16.mxu0 %v470
        %532 = vmatpush2.bf16.msra.mxu0 %v469
        %533 = vmatprep.subr.bf16.mxu0 %v468
        %534 = vmatpush2.bf16.msra.mxu0 %v467
        %535 = vmatprep.subr.bf16.mxu0 %v466
        %536 = vmatpush2.bf16.msra.mxu0 %v465
        %537 = vmatprep.subr.bf16.mxu0 %v464
        %538 = vmatpush2.bf16.msra.mxu0 %v463
        %539 = vmatprep.subr.bf16.mxu0 %v462
        %540 = vmatpush2.bf16.msra.mxu0 %v461
        %541 = vmatprep.mubr.bf16.mxu0 %v348
        %542 = vmatmul.mubr.bf16.gmra.mxu0 %v347
        %v543 = vpop.f32.mrf.mxu0
        %v544 = vadd.f32 0.0, %v543
        %v545 = vpop.f32.mrf.mxu0
        %v546 = vadd.f32 0.0, %v545
        %v547 = vpop.f32.mrf.mxu0
        %v548 = vpop.f32.mrf.mxu0
        %549 = vdwg.mxu0
        %v550 = vadd.f32 %v544, %v336
        %v551 = vmul.f32 %v550, 0.5
        %v552 = vmul.f32 %v550, 0.70710677
        %v553 = verf.f32.pop %v552
        %v554 = vadd.f32 %v553, 1.0
        %v555 = vmul.f32 %v551, %v554
        %556 = vst [vmem:[%s230] sm:$0xff] %v555
        %v557 = vadd.f32 %v546, %v336
        %v558 = vmul.f32 %v557, 0.5
        %v559 = vmul.f32 %v557, 0.70710677
        %v560 = verf.f32.pop %v559
        %v561 = vadd.f32 %v560, 1.0
        %v562 = vmul.f32 %v558, %v561
        %s563 = scalar_lea.vmem %s230, 8 [#allocation2]
        %564 = vst [vmem:[%s563] sm:$0xff] %v562
        %s565 = sand.u32 %s142, 1
        %s566 = scalar_lea.sflag [#allocation3], %s565
        %s567 = sand.u32 %s142, 1
        %s568 = smul.addr %s567, 16
        %s569 = scalar_lea.vmem [#allocation2], %s568
        // Predicated region
        $region41: #{_lambda_.1} parent=39 // pred_check
          %p570 = pneg %p152
        $region42: #{_lambda_.1} parent=39 // pred_check_branch
          %572 = sbr.rel (%p570) target = $region44
        $region43: #{_lambda_.1} parent=39 // pred_region
          %s574 = ssub.s32 256, 256
          %575 = vsyncadd %s566, %s574
          %s576 = smul.addr %s19, 128
          %s577 = scalar_lea.hbm %s5, %s576
          %s578 = sshll.u32 %s569, 4
          %s579 = int_to_ptr.vmem [resolvable:$true] %s578
          %584 = dma.vmem_to_hbm [thread:$0]  %s579, 256, %s577, %s566, 128, 256, 8
        $region44: #{_lambda_.1} parent=39 // pred_fallthru
          _
      $region40: #{_lambda_.1} parent=5 // pred_fallthru
        _
      %p585 = scmp.le.s32.totalorder 2, %s14
      // Predicated region
      $region45: #{_lambda_.1} parent=5 // pred_check
        %p586 = pneg %p585
      $region46: #{_lambda_.1} parent=5 // pred_check_branch
        %588 = sbr.rel (%p586) target = $region48
      $region47: #{_lambda_.1} parent=5 // pred_region
        %s589 = ssub.s32 %s14, 2
        // Predicated region
        $region49: #{_lambda_.1} parent=47 // pred_check
          %p590 = pneg %p158
        $region50: #{_lambda_.1} parent=47 // pred_check_branch
          %592 = sbr.rel (%p590) target = $region52
        $region51: #{_lambda_.1} parent=47 // pred_region
          %s593 = sand.u32 %s143, 1
          %s594 = scalar_lea.sflag [#allocation3], %s593
          %s595 = sand.u32 %s143, 1
          %s596 = smul.addr %s595, 16
          %s597 = scalar_lea.vmem [#allocation2], %s596
          %598 = dma.done %s594, 256
        $region52: #{_lambda_.1} parent=47 // pred_fallthru
          _
      $region48: #{_lambda_.1} parent=5 // pred_fallthru
        _
    $region6: #{_lambda_.1} parent=1 // loop_footer
      %s18 = sadd.s32 1, %s14
    $region7: #{_lambda_.1} parent=1 // loop_footer_branch
      %13 = sbr.rel target = $region3
    $region8: #{_lambda_.1} parent=1 // loop_exit
      _
    %599 = vsyncpa [#allocation3], 1
    %s600 = scalar_lea.sflag [#allocation3], 1
    %601 = vsyncpa %s600, 1

</llo_original>
